<compile_context>
chip_gen: v7x
topology: tpu7x:2x2x1
jax: 0.10.0
libtpu: 0.0.40
codegen_flags: <defaults>
</compile_context>

<pallas_src>
import functools

import jax
import jax.numpy as jnp
from jax import lax
from jax.experimental import pallas as pl
from jax.experimental.pallas import tpu as pltpu


def _gat_kernel(x_ref, o_ref, *, seq_len, dim, chunk_items, n_chunks):
    """x_ref/o_ref block: (bt, seq_len*dim), lane-dense.  Each chunk packs
    `chunk_items` items into an (n, dim) slab (n = chunk_items*seq_len <= ~128)
    so the per-round matmuls run at MXU-friendly sizes."""
    n = chunk_items * seq_len

    # Same-item mask for the packed (n, n) similarity.  Packing is
    # position-major (packed row r belongs to item r % chunk_items), so two
    # tiny 1-D iotas + a broadcasted compare suffice (no (n, n) int32
    # intermediates, no n^2 integer divides).  Hoisted across chunks/rounds.
    if chunk_items > 1:
        row_item = lax.broadcasted_iota(jnp.int32, (n, 1), 0) % chunk_items
        col_item = lax.broadcasted_iota(jnp.int32, (1, n), 1) % chunk_items
        same_item = row_item == col_item            # (n, n) bool mask
    else:
        same_item = None                            # single item: all True

    def process_chunk(row0):
        if not isinstance(row0, int):
            row0 = pl.multiple_of(row0, chunk_items)
        rows = pl.ds(row0, chunk_items)

        # Lane-dense load of the chunk, then pack position-major:
        # rows [l*ci, (l+1)*ci) of `emb` hold position l of every item.
        x2 = x_ref[rows, :].astype(jnp.float32)     # (ci, L*D)
        emb = jnp.concatenate(
            [x2[:, l * dim:(l + 1) * dim] for l in range(seq_len)], axis=0)

        acc = emb                                    # residual sum of all 4 terms
        for _ in range(3):
            # A = emb @ emb^T.  The reference L2-normalizes emb first, but
            # only sign(A) is consumed and row norms are positive, so the
            # normalization is dropped (identical H).  Kept in f32: bf16
            # could flip signs of near-zero dot products.
            a_mat = lax.dot_general(
                emb, emb,
                dimension_numbers=(((1,), (1,)), ((), ())),
                preferred_element_type=jnp.float32)              # (n, n)
            adj = a_mat > 0
            if same_item is not None:
                adj = adj & same_item
            h = jnp.where(adj, 1.0, 0.0)                         # adjacency
            deg = jnp.sum(h, axis=-1, keepdims=True)             # (n, 1) degree
            inv = jnp.where(deg > 0, 1.0 / deg, deg)
            # Row-scale AFTER the aggregation matmul ((n, D) touch, not (n, n)).
            emb = inv * jnp.dot(h, emb, preferred_element_type=jnp.float32)
            acc = acc + emb

        # Unpack back to (ci, L*D): L static-lane-offset stores into the
        # lane-dense output block (the block's HBM DMA stays fully dense).
        out = acc.astype(o_ref.dtype)
        for l in range(seq_len):
            o_ref[rows, l * dim:(l + 1) * dim] = (
                out[l * chunk_items:(l + 1) * chunk_items, :])

    if n_chunks == 1:
        process_chunk(0)
    else:
        @pl.loop(0, n_chunks)
        def _(c):
            process_chunk(c * chunk_items)


def _num_tensorcores():
    """2 on dual-TensorCore chips (v7x), else 1."""
    try:
        kind = jax.devices()[0].device_kind.lower()
    except Exception:
        return 1
    return 2 if "7" in kind else 1


def _pick_batch_tile(batch, seq_len, dim, num_tc):
    """Largest bt dividing batch whose (bt, L*D) f32 block stays within ~2 MiB
    (x4 when double-buffered in+out), with bt 8-aligned (or the full batch) so
    the block's sublane dim satisfies the (8, 128) tiling rule.  Single-TC
    chips take the largest tile (fewest grid steps); dual-TC chips prefer a
    step count that is a multiple of the core count."""
    item_bytes = seq_len * dim * 4
    max_bt = max(1, min(batch, (2 * 1024 * 1024) // max(item_bytes, 1)))
    if num_tc > 1 and batch % (8 * num_tc) == 0:
        max_bt = min(max_bt, batch // num_tc)
    fallback = None
    for cand in range(max_bt, 0, -1):
        if batch % cand:
            continue
        if cand % 8 and cand != batch:
            continue
        steps = batch // cand
        if num_tc > 1 and steps > 1 and steps % num_tc:
            if fallback is None:
                fallback = cand
            continue
        return cand
    return fallback if fallback is not None else batch


def _pick_chunk_items(bt, seq_len):
    """Largest divisor of bt with chunk_items*seq_len <= 128 packed rows,
    preferring sublane-aligned (multiple of 8) chunk sizes."""
    max_ci = max(1, min(bt, 128 // max(seq_len, 1)))
    aligned = [c for c in range(1, max_ci + 1) if bt % c == 0 and c % 8 == 0]
    if aligned:
        return max(aligned)
    divisors = [c for c in range(1, max_ci + 1) if bt % c == 0]
    return max(divisors) if divisors else 1


def graph_attention_layer(item_emb):
    """item_emb: [batch, seq_len, dim] float32 -> same shape."""
    batch, seq_len, dim = item_emb.shape
    lane = seq_len * dim
    num_tc = _num_tensorcores()
    bt = _pick_batch_tile(batch, seq_len, dim, num_tc)
    chunk_items = _pick_chunk_items(bt, seq_len)
    n_chunks = bt // chunk_items
    grid = (batch // bt,)

    # Free, contiguous reshape so the pallas_call I/O is lane-dense.
    x2d = item_emb.reshape(batch, lane)

    kernel = functools.partial(
        _gat_kernel, seq_len=seq_len, dim=dim,
        chunk_items=chunk_items, n_chunks=n_chunks)

    out2d = pl.pallas_call(
        kernel,
        out_shape=jax.ShapeDtypeStruct((batch, lane), item_emb.dtype),
        grid_spec=pltpu.PrefetchScalarGridSpec(
            num_scalar_prefetch=0,
            grid=grid,
            in_specs=[pl.BlockSpec((bt, lane), lambda b: (b, 0))],
            out_specs=pl.BlockSpec((bt, lane), lambda b: (b, 0)),
        ),
        compiler_params=pltpu.CompilerParams(
            dimension_semantics=("parallel",)),
    )(x2d)
    return out2d.reshape(batch, seq_len, dim)


def _reference(item_emb):
    """Pure-JAX reference mirroring the PyTorch module exactly."""
    emb = item_emb
    final = [emb]
    for _ in range(3):
        norm = jnp.sqrt(jnp.sum(emb * emb, axis=2, keepdims=True))
        a = emb / jnp.maximum(norm, 1e-12)
        A = jnp.einsum("bld,bmd->blm", a, a)
        H = jnp.where(A > 0, 1.0, 0.0)
        B = jnp.sum(H, axis=2)
        B = jnp.where(B > 0, 1.0 / B, B)
        emb = jnp.einsum("blm,bmd->bld", B[:, :, None] * H, emb)
        final.append(emb)
    return jnp.sum(jnp.stack(final), axis=0)


if __name__ == "__main__":
    key = jax.random.PRNGKey(0)
    batch, seq_len, dim = 8, 8, 32
    item_emb = jax.random.normal(key, (batch, seq_len, dim), dtype=jnp.float32)

    out = graph_attention_layer(item_emb)
    out = jax.block_until_ready(out)

    ref = _reference(item_emb)
    assert out.shape == (batch, seq_len, dim)
    assert jnp.allclose(out, ref, atol=1e-4, rtol=1e-4), "mismatch vs reference"

    print("KERNEL_OK")
</pallas_src>

<mosaic_0001>
module attributes {stable_mosaic.version = 11 : i64} {
  func.func @_gat_kernel(%arg0: i32, %arg1: memref<8x256xf32, #tpu.memory_space<vmem>>, %arg2: memref<8x256xf32, #tpu.memory_space<vmem>>) attributes {dimension_semantics = [#tpu.dimension_semantics<parallel>], iteration_bounds = array<i64: 1>, scalar_prefetch = 0 : i64, scratch_operands = 0 : i64, tpu.core_type = #tpu.core_type<tc>, window_params = [{transform_indices = @transform_0, window_bounds = array<i64: 8, 256>}, {transform_indices = @transform_1, window_bounds = array<i64: 8, 256>}]} {
    %0 = tpu.iota {dimensions = array<i32: 0>} : vector<64x1xi32>
    %c8_i32 = arith.constant 8 : i32
    %c0_i32 = arith.constant 0 : i32
    %1 = arith.cmpi eq, %c8_i32, %c0_i32 : i32
    %c1_i32 = arith.constant 1 : i32
    %2 = arith.select %1, %c1_i32, %c8_i32 : i32
    %3 = vector.broadcast %2 : i32 to vector<64x1xi32>
    %4 = arith.remsi %0, %3 : vector<64x1xi32>
    %c0_i32_0 = arith.constant 0 : i32
    %5 = vector.broadcast %c0_i32_0 : i32 to vector<64x1xi32>
    %6 = arith.cmpi ne, %4, %5 : vector<64x1xi32>
    %c0_i32_1 = arith.constant 0 : i32
    %7 = vector.broadcast %c0_i32_1 : i32 to vector<64x1xi32>
    %8 = arith.cmpi slt, %4, %7 : vector<64x1xi32>
    %c0_i32_2 = arith.constant 0 : i32
    %9 = arith.cmpi slt, %2, %c0_i32_2 : i32
    %10 = vector.broadcast %9 : i1 to vector<64x1xi1>
    %11 = vector.broadcast %10 : vector<64x1xi1> to vector<64x1xi1>
    %12 = arith.xori %8, %11 : vector<64x1xi1>
    %13 = arith.andi %12, %6 : vector<64x1xi1>
    %14 = vector.broadcast %2 : i32 to vector<64x1xi32>
    %15 = arith.addi %4, %14 : vector<64x1xi32>
    %16 = arith.select %13, %15, %4 : vector<64x1xi1>, vector<64x1xi32>
    %17 = tpu.iota {dimensions = array<i32: 1>} : vector<1x64xi32>
    %c8_i32_3 = arith.constant 8 : i32
    %c0_i32_4 = arith.constant 0 : i32
    %18 = arith.cmpi eq, %c8_i32_3, %c0_i32_4 : i32
    %c1_i32_5 = arith.constant 1 : i32
    %19 = arith.select %18, %c1_i32_5, %c8_i32_3 : i32
    %20 = vector.broadcast %19 : i32 to vector<1x64xi32>
    %21 = arith.remsi %17, %20 : vector<1x64xi32>
    %c0_i32_6 = arith.constant 0 : i32
    %22 = vector.broadcast %c0_i32_6 : i32 to vector<1x64xi32>
    %23 = arith.cmpi ne, %21, %22 : vector<1x64xi32>
    %c0_i32_7 = arith.constant 0 : i32
    %24 = vector.broadcast %c0_i32_7 : i32 to vector<1x64xi32>
    %25 = arith.cmpi slt, %21, %24 : vector<1x64xi32>
    %c0_i32_8 = arith.constant 0 : i32
    %26 = arith.cmpi slt, %19, %c0_i32_8 : i32
    %27 = vector.broadcast %26 : i1 to vector<1x64xi1>
    %28 = vector.broadcast %27 : vector<1x64xi1> to vector<1x64xi1>
    %29 = arith.xori %25, %28 : vector<1x64xi1>
    %30 = arith.andi %29, %23 : vector<1x64xi1>
    %31 = vector.broadcast %19 : i32 to vector<1x64xi32>
    %32 = arith.addi %21, %31 : vector<1x64xi32>
    %33 = arith.select %30, %32, %21 : vector<1x64xi1>, vector<1x64xi32>
    %34 = vector.broadcast %16 : vector<64x1xi32> to vector<64x64xi32>
    %35 = vector.broadcast %33 : vector<1x64xi32> to vector<64x64xi32>
    %36 = arith.cmpi eq, %34, %35 : vector<64x64xi32>
    %c0 = arith.constant 0 : index
    %c0_9 = arith.constant 0 : index
    %37 = vector.load %arg1[%c0, %c0_9] : memref<8x256xf32, #tpu.memory_space<vmem>>, vector<8x256xf32>
    %38 = vector.extract_strided_slice %37 {offsets = [0, 0], sizes = [8, 32], strides = [1, 1]} : vector<8x256xf32> to vector<8x32xf32>
    %39 = vector.extract_strided_slice %37 {offsets = [0, 32], sizes = [8, 32], strides = [1, 1]} : vector<8x256xf32> to vector<8x32xf32>
    %40 = vector.extract_strided_slice %37 {offsets = [0, 64], sizes = [8, 32], strides = [1, 1]} : vector<8x256xf32> to vector<8x32xf32>
    %41 = vector.extract_strided_slice %37 {offsets = [0, 96], sizes = [8, 32], strides = [1, 1]} : vector<8x256xf32> to vector<8x32xf32>
    %42 = vector.extract_strided_slice %37 {offsets = [0, 128], sizes = [8, 32], strides = [1, 1]} : vector<8x256xf32> to vector<8x32xf32>
    %43 = vector.extract_strided_slice %37 {offsets = [0, 160], sizes = [8, 32], strides = [1, 1]} : vector<8x256xf32> to vector<8x32xf32>
    %44 = vector.extract_strided_slice %37 {offsets = [0, 192], sizes = [8, 32], strides = [1, 1]} : vector<8x256xf32> to vector<8x32xf32>
    %45 = vector.extract_strided_slice %37 {offsets = [0, 224], sizes = [8, 32], strides = [1, 1]} : vector<8x256xf32> to vector<8x32xf32>
    %46 = tpu.concatenate %38, %39, %40, %41, %42, %43, %44, %45 in 0 : vector<8x32xf32>, vector<8x32xf32>, vector<8x32xf32>, vector<8x32xf32>, vector<8x32xf32>, vector<8x32xf32>, vector<8x32xf32>, vector<8x32xf32> -> vector<64x32xf32>
    %cst = arith.constant dense<0.000000e+00> : vector<64x64xf32>
    %47 = tpu.matmul %46, %46, %cst {dimension_numbers = #tpu.dot_dimension_numbers<[1], [1], [0], [0], [0, 0, 1, 0], [], []>} : vector<64x32xf32>, vector<64x32xf32>, vector<64x64xf32> -> vector<64x64xf32>
    %cst_10 = arith.constant 0.000000e+00 : f32
    %48 = vector.broadcast %cst_10 : f32 to vector<64x64xf32>
    %49 = arith.cmpf ogt, %47, %48 : vector<64x64xf32>
    %50 = arith.andi %49, %36 : vector<64x64xi1>
    %cst_11 = arith.constant 1.000000e+00 : f32
    %cst_12 = arith.constant 0.000000e+00 : f32
    %51 = vector.broadcast %cst_11 : f32 to vector<64x64xf32>
    %52 = vector.broadcast %cst_12 : f32 to vector<64x64xf32>
    %53 = arith.select %50, %51, %52 : vector<64x64xi1>, vector<64x64xf32>
    %cst_13 = arith.constant dense<0.000000e+00> : vector<64xf32>
    %54 = vector.multi_reduction <add>, %53, %cst_13 [1] : vector<64x64xf32> to vector<64xf32>
    %55 = vector.shape_cast %54 : vector<64xf32> to vector<64x1xf32>
    %cst_14 = arith.constant 0.000000e+00 : f32
    %56 = vector.broadcast %cst_14 : f32 to vector<64x1xf32>
    %57 = arith.cmpf ogt, %55, %56 : vector<64x1xf32>
    %cst_15 = arith.constant 1.000000e+00 : f32
    %58 = vector.broadcast %cst_15 : f32 to vector<64x1xf32>
    %59 = arith.divf %58, %55 : vector<64x1xf32>
    %60 = arith.select %57, %59, %55 : vector<64x1xi1>, vector<64x1xf32>
    %cst_16 = arith.constant dense<0.000000e+00> : vector<64x32xf32>
    %61 = tpu.matmul %53, %46, %cst_16 {dimension_numbers = #tpu.dot_dimension_numbers<[1], [0], [0], [1], [0, 0, 1, 1], [], []>} : vector<64x64xf32>, vector<64x32xf32>, vector<64x32xf32> -> vector<64x32xf32>
    %62 = vector.broadcast %60 : vector<64x1xf32> to vector<64x32xf32>
    %63 = arith.mulf %62, %61 : vector<64x32xf32>
    %64 = arith.addf %46, %63 : vector<64x32xf32>
    %cst_17 = arith.constant dense<0.000000e+00> : vector<64x64xf32>
    %65 = tpu.matmul %63, %63, %cst_17 {dimension_numbers = #tpu.dot_dimension_numbers<[1], [1], [0], [0], [0, 0, 1, 0], [], []>} : vector<64x32xf32>, vector<64x32xf32>, vector<64x64xf32> -> vector<64x64xf32>
    %cst_18 = arith.constant 0.000000e+00 : f32
    %66 = vector.broadcast %cst_18 : f32 to vector<64x64xf32>
    %67 = arith.cmpf ogt, %65, %66 : vector<64x64xf32>
    %68 = arith.andi %67, %36 : vector<64x64xi1>
    %cst_19 = arith.constant 1.000000e+00 : f32
    %cst_20 = arith.constant 0.000000e+00 : f32
    %69 = vector.broadcast %cst_19 : f32 to vector<64x64xf32>
    %70 = vector.broadcast %cst_20 : f32 to vector<64x64xf32>
    %71 = arith.select %68, %69, %70 : vector<64x64xi1>, vector<64x64xf32>
    %cst_21 = arith.constant dense<0.000000e+00> : vector<64xf32>
    %72 = vector.multi_reduction <add>, %71, %cst_21 [1] : vector<64x64xf32> to vector<64xf32>
    %73 = vector.shape_cast %72 : vector<64xf32> to vector<64x1xf32>
    %cst_22 = arith.constant 0.000000e+00 : f32
    %74 = vector.broadcast %cst_22 : f32 to vector<64x1xf32>
    %75 = arith.cmpf ogt, %73, %74 : vector<64x1xf32>
    %cst_23 = arith.constant 1.000000e+00 : f32
    %76 = vector.broadcast %cst_23 : f32 to vector<64x1xf32>
    %77 = arith.divf %76, %73 : vector<64x1xf32>
    %78 = arith.select %75, %77, %73 : vector<64x1xi1>, vector<64x1xf32>
    %cst_24 = arith.constant dense<0.000000e+00> : vector<64x32xf32>
    %79 = tpu.matmul %71, %63, %cst_24 {dimension_numbers = #tpu.dot_dimension_numbers<[1], [0], [0], [1], [0, 0, 1, 1], [], []>} : vector<64x64xf32>, vector<64x32xf32>, vector<64x32xf32> -> vector<64x32xf32>
    %80 = vector.broadcast %78 : vector<64x1xf32> to vector<64x32xf32>
    %81 = arith.mulf %80, %79 : vector<64x32xf32>
    %82 = arith.addf %64, %81 : vector<64x32xf32>
    %cst_25 = arith.constant dense<0.000000e+00> : vector<64x64xf32>
    %83 = tpu.matmul %81, %81, %cst_25 {dimension_numbers = #tpu.dot_dimension_numbers<[1], [1], [0], [0], [0, 0, 1, 0], [], []>} : vector<64x32xf32>, vector<64x32xf32>, vector<64x64xf32> -> vector<64x64xf32>
    %cst_26 = arith.constant 0.000000e+00 : f32
    %84 = vector.broadcast %cst_26 : f32 to vector<64x64xf32>
    %85 = arith.cmpf ogt, %83, %84 : vector<64x64xf32>
    %86 = arith.andi %85, %36 : vector<64x64xi1>
    %cst_27 = arith.constant 1.000000e+00 : f32
    %cst_28 = arith.constant 0.000000e+00 : f32
    %87 = vector.broadcast %cst_27 : f32 to vector<64x64xf32>
    %88 = vector.broadcast %cst_28 : f32 to vector<64x64xf32>
    %89 = arith.select %86, %87, %88 : vector<64x64xi1>, vector<64x64xf32>
    %cst_29 = arith.constant dense<0.000000e+00> : vector<64xf32>
    %90 = vector.multi_reduction <add>, %89, %cst_29 [1] : vector<64x64xf32> to vector<64xf32>
    %91 = vector.shape_cast %90 : vector<64xf32> to vector<64x1xf32>
    %cst_30 = arith.constant 0.000000e+00 : f32
    %92 = vector.broadcast %cst_30 : f32 to vector<64x1xf32>
    %93 = arith.cmpf ogt, %91, %92 : vector<64x1xf32>
    %cst_31 = arith.constant 1.000000e+00 : f32
    %94 = vector.broadcast %cst_31 : f32 to vector<64x1xf32>
    %95 = arith.divf %94, %91 : vector<64x1xf32>
    %96 = arith.select %93, %95, %91 : vector<64x1xi1>, vector<64x1xf32>
    %cst_32 = arith.constant dense<0.000000e+00> : vector<64x32xf32>
    %97 = tpu.matmul %89, %81, %cst_32 {dimension_numbers = #tpu.dot_dimension_numbers<[1], [0], [0], [1], [0, 0, 1, 1], [], []>} : vector<64x64xf32>, vector<64x32xf32>, vector<64x32xf32> -> vector<64x32xf32>
    %98 = vector.broadcast %96 : vector<64x1xf32> to vector<64x32xf32>
    %99 = arith.mulf %98, %97 : vector<64x32xf32>
    %100 = arith.addf %82, %99 : vector<64x32xf32>
    %101 = vector.extract_strided_slice %100 {offsets = [0, 0], sizes = [8, 32], strides = [1, 1]} : vector<64x32xf32> to vector<8x32xf32>
    %c0_33 = arith.constant 0 : index
    %c0_34 = arith.constant 0 : index
    %102 = vector.load %arg2[%c0_33, %c0_34] : memref<8x256xf32, #tpu.memory_space<vmem>>, vector<8x32xf32>
    tpu.vector_store %arg2[%c0_33, %c0_34], %101 {strides = array<i32>} : memref<8x256xf32, #tpu.memory_space<vmem>>, vector<8x32xf32>,
    %103 = vector.extract_strided_slice %100 {offsets = [8, 0], sizes = [8, 32], strides = [1, 1]} : vector<64x32xf32> to vector<8x32xf32>
    %c0_35 = arith.constant 0 : index
    %c32 = arith.constant 32 : index
    %104 = vector.load %arg2[%c0_35, %c32] : memref<8x256xf32, #tpu.memory_space<vmem>>, vector<8x32xf32>
    tpu.vector_store %arg2[%c0_35, %c32], %103 {strides = array<i32>} : memref<8x256xf32, #tpu.memory_space<vmem>>, vector<8x32xf32>,
    %105 = vector.extract_strided_slice %100 {offsets = [16, 0], sizes = [8, 32], strides = [1, 1]} : vector<64x32xf32> to vector<8x32xf32>
    %c0_36 = arith.constant 0 : index
    %c64 = arith.constant 64 : index
    %106 = vector.load %arg2[%c0_36, %c64] : memref<8x256xf32, #tpu.memory_space<vmem>>, vector<8x32xf32>
    tpu.vector_store %arg2[%c0_36, %c64], %105 {strides = array<i32>} : memref<8x256xf32, #tpu.memory_space<vmem>>, vector<8x32xf32>,
    %107 = vector.extract_strided_slice %100 {offsets = [24, 0], sizes = [8, 32], strides = [1, 1]} : vector<64x32xf32> to vector<8x32xf32>
    %c0_37 = arith.constant 0 : index
    %c96 = arith.constant 96 : index
    %108 = vector.load %arg2[%c0_37, %c96] : memref<8x256xf32, #tpu.memory_space<vmem>>, vector<8x32xf32>
    tpu.vector_store %arg2[%c0_37, %c96], %107 {strides = array<i32>} : memref<8x256xf32, #tpu.memory_space<vmem>>, vector<8x32xf32>,
    %109 = vector.extract_strided_slice %100 {offsets = [32, 0], sizes = [8, 32], strides = [1, 1]} : vector<64x32xf32> to vector<8x32xf32>
    %c0_38 = arith.constant 0 : index
    %c128 = arith.constant 128 : index
    %110 = vector.load %arg2[%c0_38, %c128] : memref<8x256xf32, #tpu.memory_space<vmem>>, vector<8x32xf32>
    tpu.vector_store %arg2[%c0_38, %c128], %109 {strides = array<i32>} : memref<8x256xf32, #tpu.memory_space<vmem>>, vector<8x32xf32>,
    %111 = vector.extract_strided_slice %100 {offsets = [40, 0], sizes = [8, 32], strides = [1, 1]} : vector<64x32xf32> to vector<8x32xf32>
    %c0_39 = arith.constant 0 : index
    %c160 = arith.constant 160 : index
    %112 = vector.load %arg2[%c0_39, %c160] : memref<8x256xf32, #tpu.memory_space<vmem>>, vector<8x32xf32>
    tpu.vector_store %arg2[%c0_39, %c160], %111 {strides = array<i32>} : memref<8x256xf32, #tpu.memory_space<vmem>>, vector<8x32xf32>,
    %113 = vector.extract_strided_slice %100 {offsets = [48, 0], sizes = [8, 32], strides = [1, 1]} : vector<64x32xf32> to vector<8x32xf32>
    %c0_40 = arith.constant 0 : index
    %c192 = arith.constant 192 : index
    %114 = vector.load %arg2[%c0_40, %c192] : memref<8x256xf32, #tpu.memory_space<vmem>>, vector<8x32xf32>
    tpu.vector_store %arg2[%c0_40, %c192], %113 {strides = array<i32>} : memref<8x256xf32, #tpu.memory_space<vmem>>, vector<8x32xf32>,
    %115 = vector.extract_strided_slice %100 {offsets = [56, 0], sizes = [8, 32], strides = [1, 1]} : vector<64x32xf32> to vector<8x32xf32>
    %c0_41 = arith.constant 0 : index
    %c224 = arith.constant 224 : index
    %116 = vector.load %arg2[%c0_41, %c224] : memref<8x256xf32, #tpu.memory_space<vmem>>, vector<8x32xf32>
    tpu.vector_store %arg2[%c0_41, %c224], %115 {strides = array<i32>} : memref<8x256xf32, #tpu.memory_space<vmem>>, vector<8x32xf32>,
    return
  }
  func.func @transform_0(%arg0: i32) -> (i32, i32) {
    %c0_i32 = arith.constant 0 : i32
    %c0_i32_0 = arith.constant 0 : i32
    return %arg0, %c0_i32 : i32, i32
  }
  func.func @transform_1(%arg0: i32) -> (i32, i32) {
    %c0_i32 = arith.constant 0 : i32
    %c0_i32_0 = arith.constant 0 : i32
    return %arg0, %c0_i32 : i32, i32
  }
}

</mosaic_0001>

<llo_original>
// kernel: tpu_custom_call.1
$region0: #{tpu_custom_call.1}
  #allocation0 [shape = 'u32[]', space=smem, size = 0x4, offset = 0x4, fixed_abs, tag = 'smem constant byte address 0x4 - core index']
  #allocation1 [shape = 'u32[144,128]{1,0:T(1,128)}', space=vmem, size = 0x12000, scoped, tag = 'internal scratch']
  %s0 = inlined_call_operand.hbm [shape: f32[8,256], index: 0, kind: input, shape index: {}]
  %s1 = inlined_call_operand.hbm [shape: f32[8,256], index: 1, kind: output, shape index: {}]
  %s2 = sld [smem:[#allocation0]]
  $region18: #{tpu_custom_call.1} parent=0
    _
  %s4 = ssub.s32 1, %s2
  %s5 = scalar_select 0, %s4, %s2
  $region1: #{tpu_custom_call.1} parent=0
    #allocation2 [shape = 'u8[8192]{0}', space=vmem, size = 0x2000, scoped, tag = 'input window, operand 0, single buffered']
    #allocation3 [shape = 's32[1]{0}', space=sflag, size = 0x4, scoped, tag = 'scoped memory for tpu_custom_call.1']
    #allocation4 [shape = 's32[1]{0}', space=sflag, size = 0x4, scoped, tag = 'scoped memory for tpu_custom_call.1']
    #allocation5 [shape = 'u8[8192]{0}', space=vmem, size = 0x2000, scoped, tag = 'output window, operand 0, single buffered']
    %6 = vsyncpa [#allocation3], 0
    %7 = vsyncpa [#allocation4], 0
    // Predicated region
    $region2: #{tpu_custom_call.1} parent=1 // pred_check
      _
    $region3: #{tpu_custom_call.1} parent=1 // pred_check_branch
      %9 = sbr.rel (0) target = $region5
    $region4: #{tpu_custom_call.1} parent=1 // pred_region
      %s11 = ssub.s32 256, 256
      %12 = vsyncadd [#allocation3], %s11
      %s14 = sshll.u32 [#allocation2], 4
      %s15 = int_to_ptr.vmem [resolvable:$true] %s14
      %17 = dma.hbm_to_vmem [thread:$0]  %s0, 256, %s15, [#allocation3]
    $region5: #{tpu_custom_call.1} parent=1 // pred_fallthru
      _
    // Predicated region
    $region6: #{tpu_custom_call.1} parent=1 // pred_check
      _
    $region7: #{tpu_custom_call.1} parent=1 // pred_check_branch
      %19 = sbr.rel (0) target = $region9
    $region8: #{tpu_custom_call.1} parent=1 // pred_region
      %20 = dma.done [#allocation3], 256
    $region9: #{tpu_custom_call.1} parent=1 // pred_fallthru
      _
    %v21 = vlaneseq
    %v22 = vshrl.u32 %v21, 7
    %v23 = vadd.s32 %v22, 8
    %v24 = vadd.s32 %v22, 16
    %v25 = vadd.s32 %v22, 24
    %v26 = vadd.s32 %v22, 32
    %v27 = vadd.s32 %v22, 40
    %v28 = vadd.s32 %v22, 48
    %v29 = vadd.s32 %v22, 56
    %vm30 = vcmp.lt.s32.totalorder %v22, 0
    %v31 = vsub.s32 0, %v22
    %v32 = vsel %vm30, %v31, %v22
    %v33 = vshrl.u32 %v32, 3
    %v34 = vand.u32 %v32, 7
    %v35 = vsub.s32 0, %v34
    %v36 = vsel %vm30, %v35, %v34
    %vm37 = vcmp.lt.s32.totalorder %v23, 0
    %v38 = vsub.s32 0, %v23
    %v39 = vsel %vm37, %v38, %v23
    %v40 = vshrl.u32 %v39, 3
    %v41 = vand.u32 %v39, 7
    %v42 = vsub.s32 0, %v41
    %v43 = vsel %vm37, %v42, %v41
    %vm44 = vcmp.lt.s32.totalorder %v24, 0
    %v45 = vsub.s32 0, %v24
    %v46 = vsel %vm44, %v45, %v24
    %v47 = vshrl.u32 %v46, 3
    %v48 = vand.u32 %v46, 7
    %v49 = vsub.s32 0, %v48
    %v50 = vsel %vm44, %v49, %v48
    %vm51 = vcmp.lt.s32.totalorder %v25, 0
    %v52 = vsub.s32 0, %v25
    %v53 = vsel %vm51, %v52, %v25
    %v54 = vshrl.u32 %v53, 3
    %v55 = vand.u32 %v53, 7
    %v56 = vsub.s32 0, %v55
    %v57 = vsel %vm51, %v56, %v55
    %vm58 = vcmp.lt.s32.totalorder %v26, 0
    %v59 = vsub.s32 0, %v26
    %v60 = vsel %vm58, %v59, %v26
    %v61 = vshrl.u32 %v60, 3
    %v62 = vand.u32 %v60, 7
    %v63 = vsub.s32 0, %v62
    %v64 = vsel %vm58, %v63, %v62
    %vm65 = vcmp.lt.s32.totalorder %v27, 0
    %v66 = vsub.s32 0, %v27
    %v67 = vsel %vm65, %v66, %v27
    %v68 = vshrl.u32 %v67, 3
    %v69 = vand.u32 %v67, 7
    %v70 = vsub.s32 0, %v69
    %v71 = vsel %vm65, %v70, %v69
    %vm72 = vcmp.lt.s32.totalorder %v28, 0
    %v73 = vsub.s32 0, %v28
    %v74 = vsel %vm72, %v73, %v28
    %v75 = vshrl.u32 %v74, 3
    %v76 = vand.u32 %v74, 7
    %v77 = vsub.s32 0, %v76
    %v78 = vsel %vm72, %v77, %v76
    %vm79 = vcmp.lt.s32.totalorder %v29, 0
    %v80 = vsub.s32 0, %v29
    %v81 = vsel %vm79, %v80, %v29
    %v82 = vshrl.u32 %v81, 3
    %v83 = vand.u32 %v81, 7
    %v84 = vsub.s32 0, %v83
    %v85 = vsel %vm79, %v84, %v83
    %vm86 = vcmp.ne.s32.totalorder %v36, 0
    %vm87 = vcmp.ne.s32.totalorder %v43, 0
    %vm88 = vcmp.ne.s32.totalorder %v50, 0
    %vm89 = vcmp.ne.s32.totalorder %v57, 0
    %vm90 = vcmp.ne.s32.totalorder %v64, 0
    %vm91 = vcmp.ne.s32.totalorder %v71, 0
    %vm92 = vcmp.ne.s32.totalorder %v78, 0
    %vm93 = vcmp.ne.s32.totalorder %v85, 0
    %vm94 = vcmp.lt.s32.totalorder %v36, 0
    %vm95 = vcmp.lt.s32.totalorder %v43, 0
    %vm96 = vcmp.lt.s32.totalorder %v50, 0
    %vm97 = vcmp.lt.s32.totalorder %v57, 0
    %vm98 = vcmp.lt.s32.totalorder %v64, 0
    %vm99 = vcmp.lt.s32.totalorder %v71, 0
    %vm100 = vcmp.lt.s32.totalorder %v78, 0
    %vm101 = vcmp.lt.s32.totalorder %v85, 0
    %vm102 = vmand %vm94, %vm86
    %vm103 = vmand %vm95, %vm87
    %vm104 = vmand %vm96, %vm88
    %vm105 = vmand %vm97, %vm89
    %vm106 = vmand %vm98, %vm90
    %vm107 = vmand %vm99, %vm91
    %vm108 = vmand %vm100, %vm92
    %vm109 = vmand %vm101, %vm93
    %v110 = vadd.s32 %v36, 8
    %v111 = vadd.s32 %v43, 8
    %v112 = vadd.s32 %v50, 8
    %v113 = vadd.s32 %v57, 8
    %v114 = vadd.s32 %v64, 8
    %v115 = vadd.s32 %v71, 8
    %v116 = vadd.s32 %v78, 8
    %v117 = vadd.s32 %v85, 8
    %v118 = vsel %vm102, %v110, %v36
    %v119 = vsel %vm103, %v111, %v43
    %v120 = vsel %vm104, %v112, %v50
    %v121 = vsel %vm105, %v113, %v57
    %v122 = vsel %vm106, %v114, %v64
    %v123 = vsel %vm107, %v115, %v71
    %v124 = vsel %vm108, %v116, %v78
    %v125 = vsel %vm109, %v117, %v85
    %v126 = vlaneseq
    %v127 = vand.u32 %v126, 127
    %vm128 = vcmp.lt.s32.totalorder %v127, 0
    %v129 = vsub.s32 0, %v127
    %v130 = vsel %vm128, %v129, %v127
    %v131 = vshrl.u32 %v130, 3
    %v132 = vand.u32 %v130, 7
    %v133 = vsub.s32 0, %v132
    %v134 = vsel %vm128, %v133, %v132
    %vm135 = vcmp.ne.s32.totalorder %v134, 0
    %vm136 = vcmp.lt.s32.totalorder %v134, 0
    %vm137 = vmand %vm136, %vm135
    %v138 = vadd.s32 %v134, 8
    %v139 = vsel %vm137, %v138, %v134
    %vm140 = vcmp.eq.s32.totalorder %v118, %v139
    %vm141 = vcmp.eq.s32.totalorder %v119, %v139
    %vm142 = vcmp.eq.s32.totalorder %v120, %v139
    %vm143 = vcmp.eq.s32.totalorder %v121, %v139
    %vm144 = vcmp.eq.s32.totalorder %v122, %v139
    %vm145 = vcmp.eq.s32.totalorder %v123, %v139
    %vm146 = vcmp.eq.s32.totalorder %v124, %v139
    %vm147 = vcmp.eq.s32.totalorder %v125, %v139
    %v148 = vld [vmem:[#allocation2] sm:$0xff]
    %v149 = vld [vmem:[#allocation2 + $0x8] sm:$0xff]
    %151 = vrot.lane.b32.xlu0 %v148, 96
    %v152 = vpop.permute.xlu0 %151
    %154 = vrot.lane.b32.xlu0 %v148, 64
    %v155 = vpop.permute.xlu0 %154
    %157 = vrot.lane.b32.xlu0 %v148, 32
    %v158 = vpop.permute.xlu0 %157
    %161 = vrot.lane.b32.xlu0 %v149, 96
    %v162 = vpop.permute.xlu0 %161
    %164 = vrot.lane.b32.xlu0 %v149, 64
    %v165 = vpop.permute.xlu0 %164
    %167 = vrot.lane.b32.xlu0 %v149, 32
    %v168 = vpop.permute.xlu0 %167
    %vm170 = vcmask 261120
    %v171 = vsel %vm170, %v148, 0
    %v173 = vsel %vm170, %v152, 0
    %v175 = vsel %vm170, %v155, 0
    %v177 = vsel %vm170, %v158, 0
    %v179 = vsel %vm170, %v149, 0
    %v181 = vsel %vm170, %v162, 0
    %v183 = vsel %vm170, %v165, 0
    %v185 = vsel %vm170, %v168, 0
    %187 = vmatprep.subr.mxu0 0.0
    %188 = vmatpush1.xpose.msra.mxu0 %v171
    %189 = vmatprep.subr.mxu0 0.0
    %190 = vmatpush1.xpose.msra.mxu0 %v173
    %191 = vmatprep.subr.mxu0 0.0
    %192 = vmatpush1.xpose.msra.mxu0 %v175
    %193 = vmatprep.subr.mxu0 0.0
    %194 = vmatpush1.xpose.msra.mxu0 %v177
    %195 = vmatprep.subr.mxu0 0.0
    %196 = vmatpush1.xpose.msra.mxu0 %v179
    %197 = vmatprep.subr.mxu0 0.0
    %198 = vmatpush1.xpose.msra.mxu0 %v181
    %199 = vmatprep.subr.mxu0 0.0
    %200 = vmatpush1.xpose.msra.mxu0 %v183
    %201 = vmatprep.subr.mxu0 0.0
    %202 = vmatpush1.xpose.msra.mxu0 %v185
    %203 = vmatprep.subr.mxu0 0.0
    %204 = vmatpush1.xpose.msra.mxu0 0.0
    %205 = vmatprep.subr.mxu0 0.0
    %206 = vmatpush1.xpose.msra.mxu0 0.0
    %207 = vmatprep.subr.mxu0 0.0
    %208 = vmatpush1.xpose.msra.mxu0 0.0
    %209 = vmatprep.subr.mxu0 0.0
    %210 = vmatpush1.xpose.msra.mxu0 0.0
    %211 = vmatprep.subr.mxu0 0.0
    %212 = vmatpush1.xpose.msra.mxu0 0.0
    %213 = vmatprep.subr.mxu0 0.0
    %214 = vmatpush1.xpose.msra.mxu0 0.0
    %215 = vmatprep.subr.mxu0 0.0
    %216 = vmatpush1.xpose.msra.mxu0 0.0
    %217 = vmatprep.subr.mxu0 0.0
    %218 = vmatpush1.xpose.msra.mxu0 0.0
    %219 = vmatprep.subr.mxu0 0.0
    %220 = vmatpush1.xpose.msra.mxu0 0.0
    %221 = vmatprep.subr.mxu0 0.0
    %222 = vmatpush1.xpose.msra.mxu0 0.0
    %223 = vmatprep.subr.mxu0 0.0
    %224 = vmatpush1.xpose.msra.mxu0 0.0
    %225 = vmatprep.subr.mxu0 0.0
    %226 = vmatpush1.xpose.msra.mxu0 0.0
    %227 = vmatprep.subr.mxu0 0.0
    %228 = vmatpush1.xpose.msra.mxu0 0.0
    %229 = vmatprep.subr.mxu0 0.0
    %230 = vmatpush1.xpose.msra.mxu0 0.0
    %231 = vmatprep.subr.mxu0 0.0
    %232 = vmatpush1.xpose.msra.mxu0 0.0
    %233 = vmatprep.subr.mxu0 0.0
    %234 = vmatpush1.xpose.msra.mxu0 0.0
    %235 = vmatprep.subr.mxu0 0.0
    %236 = vmatpush1.xpose.msra.mxu0 0.0
    %237 = vmatprep.subr.mxu0 0.0
    %238 = vmatpush1.xpose.msra.mxu0 0.0
    %239 = vmatprep.subr.mxu0 0.0
    %240 = vmatpush1.xpose.msra.mxu0 0.0
    %241 = vmatprep.subr.mxu0 0.0
    %242 = vmatpush1.xpose.msra.mxu0 0.0
    %243 = vmatprep.subr.mxu0 0.0
    %244 = vmatpush1.xpose.msra.mxu0 0.0
    %245 = vmatprep.subr.mxu0 0.0
    %246 = vmatpush1.xpose.msra.mxu0 0.0
    %247 = vmatprep.subr.mxu0 0.0
    %248 = vmatpush1.xpose.msra.mxu0 0.0
    %249 = vmatprep.subr.mxu0 0.0
    %250 = vmatpush1.xpose.msra.mxu0 0.0
    %251 = vmatprep.mubr.f32.mxu0 0.0
    %252 = vmatmul.mubr.f32.gmra.mrb[0].mxu0 %v171
    %v253 = vpop.f32.mrb[0].mxu0
    %v254 = vadd.f32 0.0, %v253
    %v255 = vpop.f32.mrb[0].mxu0
    %256 = vmatprep.mubr.f32.mxu0 0.0
    %257 = vmatmul.mubr.f32.gmra.mrb[0].mxu0 %v173
    %v258 = vpop.f32.mrb[0].mxu0
    %v259 = vadd.f32 0.0, %v258
    %v260 = vpop.f32.mrb[0].mxu0
    %261 = vmatprep.mubr.f32.mxu0 0.0
    %262 = vmatmul.mubr.f32.gmra.mrb[0].mxu0 %v175
    %v263 = vpop.f32.mrb[0].mxu0
    %v264 = vadd.f32 0.0, %v263
    %v265 = vpop.f32.mrb[0].mxu0
    %266 = vmatprep.mubr.f32.mxu0 0.0
    %267 = vmatmul.mubr.f32.gmra.mrb[0].mxu0 %v177
    %v268 = vpop.f32.mrb[0].mxu0
    %v269 = vadd.f32 0.0, %v268
    %v270 = vpop.f32.mrb[0].mxu0
    %271 = vmatprep.mubr.f32.mxu0 0.0
    %272 = vmatmul.mubr.f32.gmra.mrb[0].mxu0 %v179
    %v273 = vpop.f32.mrb[0].mxu0
    %v274 = vadd.f32 0.0, %v273
    %v275 = vpop.f32.mrb[0].mxu0
    %276 = vmatprep.mubr.f32.mxu0 0.0
    %277 = vmatmul.mubr.f32.gmra.mrb[0].mxu0 %v181
    %v278 = vpop.f32.mrb[0].mxu0
    %v279 = vadd.f32 0.0, %v278
    %v280 = vpop.f32.mrb[0].mxu0
    %281 = vmatprep.mubr.f32.mxu0 0.0
    %282 = vmatmul.mubr.f32.gmra.mrb[0].mxu0 %v183
    %v283 = vpop.f32.mrb[0].mxu0
    %v284 = vadd.f32 0.0, %v283
    %v285 = vpop.f32.mrb[0].mxu0
    %286 = vmatprep.mubr.f32.mxu0 0.0
    %287 = vmatmul.mubr.f32.gmra.mrb[0].mxu0 %v185
    %v288 = vpop.f32.mrb[0].mxu0
    %v289 = vadd.f32 0.0, %v288
    %v290 = vpop.f32.mrb[0].mxu0
    %291 = vdwg.mxu0
    %vm292 = vcmp.gt.f32.partialorder %v254, 0.0
    %vm293 = vcmp.gt.f32.partialorder %v259, 0.0
    %vm294 = vcmp.gt.f32.partialorder %v264, 0.0
    %vm295 = vcmp.gt.f32.partialorder %v269, 0.0
    %vm296 = vcmp.gt.f32.partialorder %v274, 0.0
    %vm297 = vcmp.gt.f32.partialorder %v279, 0.0
    %vm298 = vcmp.gt.f32.partialorder %v284, 0.0
    %vm299 = vcmp.gt.f32.partialorder %v289, 0.0
    %vm300 = vmand %vm292, %vm140
    %vm301 = vmand %vm293, %vm141
    %vm302 = vmand %vm294, %vm142
    %vm303 = vmand %vm295, %vm143
    %vm304 = vmand %vm296, %vm144
    %vm305 = vmand %vm297, %vm145
    %vm306 = vmand %vm298, %vm146
    %vm307 = vmand %vm299, %vm147
    %v308 = vsel %vm300, 1.0, 0.0
    %v309 = vsel %vm301, 1.0, 0.0
    %v310 = vsel %vm302, 1.0, 0.0
    %v311 = vsel %vm303, 1.0, 0.0
    %v312 = vsel %vm304, 1.0, 0.0
    %v313 = vsel %vm305, 1.0, 0.0
    %v314 = vsel %vm306, 1.0, 0.0
    %v315 = vsel %vm307, 1.0, 0.0
    %vm316 = vcmask 523264
    %v317 = vsel %vm316, %v308, 0.0
    %318 = vadd.xlane.f32.xlu0 %v317
    %v319 = vpop.xlane.xlu0 %318
    %v320 = vsel %vm316, %v309, 0.0
    %321 = vadd.xlane.f32.xlu0 %v320
    %v322 = vpop.xlane.xlu0 %321
    %v323 = vsel %vm316, %v310, 0.0
    %324 = vadd.xlane.f32.xlu0 %v323
    %v325 = vpop.xlane.xlu0 %324
    %v326 = vsel %vm316, %v311, 0.0
    %327 = vadd.xlane.f32.xlu0 %v326
    %v328 = vpop.xlane.xlu0 %327
    %v329 = vsel %vm316, %v312, 0.0
    %330 = vadd.xlane.f32.xlu0 %v329
    %v331 = vpop.xlane.xlu0 %330
    %v332 = vsel %vm316, %v313, 0.0
    %333 = vadd.xlane.f32.xlu0 %v332
    %v334 = vpop.xlane.xlu0 %333
    %v335 = vsel %vm316, %v314, 0.0
    %336 = vadd.xlane.f32.xlu0 %v335
    %v337 = vpop.xlane.xlu0 %336
    %v338 = vsel %vm316, %v315, 0.0
    %339 = vadd.xlane.f32.xlu0 %v338
    %v340 = vpop.xlane.xlu0 %339
    %vm341 = vcmp.gt.f32.partialorder %v319, 0.0
    %vm342 = vcmp.gt.f32.partialorder %v322, 0.0
    %vm343 = vcmp.gt.f32.partialorder %v325, 0.0
    %vm344 = vcmp.gt.f32.partialorder %v328, 0.0
    %vm345 = vcmp.gt.f32.partialorder %v331, 0.0
    %vm346 = vcmp.gt.f32.partialorder %v334, 0.0
    %vm347 = vcmp.gt.f32.partialorder %v337, 0.0
    %vm348 = vcmp.gt.f32.partialorder %v340, 0.0
    %v349 = vrcp.pop %v319
    %v350 = vmul.f32 1.0, %v349
    %v351 = vrcp.pop %v322
    %v352 = vmul.f32 1.0, %v351
    %v353 = vrcp.pop %v325
    %v354 = vmul.f32 1.0, %v353
    %v355 = vrcp.pop %v328
    %v356 = vmul.f32 1.0, %v355
    %v357 = vrcp.pop %v331
    %v358 = vmul.f32 1.0, %v357
    %v359 = vrcp.pop %v334
    %v360 = vmul.f32 1.0, %v359
    %v361 = vrcp.pop %v337
    %v362 = vmul.f32 1.0, %v361
    %v363 = vrcp.pop %v340
    %v364 = vmul.f32 1.0, %v363
    %v365 = vsel %vm341, %v350, %v319
    %v366 = vsel %vm342, %v352, %v322
    %v367 = vsel %vm343, %v354, %v325
    %v368 = vsel %vm344, %v356, %v328
    %v369 = vsel %vm345, %v358, %v331
    %v370 = vsel %vm346, %v360, %v334
    %v371 = vsel %vm347, %v362, %v337
    %v372 = vsel %vm348, %v364, %v340
    %v374 = vsel %vm316, %v308, 0
    %v377 = vsel %vm316, %v309, 0
    %v380 = vsel %vm316, %v310, 0
    %v383 = vsel %vm316, %v311, 0
    %v386 = vsel %vm316, %v312, 0
    %v389 = vsel %vm316, %v313, 0
    %v392 = vsel %vm316, %v314, 0
    %v395 = vsel %vm316, %v315, 0
    %397 = vmatprep.subr.mxu0 0.0
    %398 = vmatpush1.msra.mxu0 %v148
    %399 = vmatprep.subr.mxu0 0.0
    %400 = vmatpush1.msra.mxu0 %v152
    %401 = vmatprep.subr.mxu0 0.0
    %402 = vmatpush1.msra.mxu0 %v155
    %403 = vmatprep.subr.mxu0 0.0
    %404 = vmatpush1.msra.mxu0 %v158
    %405 = vmatprep.subr.mxu0 0.0
    %406 = vmatpush1.msra.mxu0 %v149
    %407 = vmatprep.subr.mxu0 0.0
    %408 = vmatpush1.msra.mxu0 %v162
    %409 = vmatprep.subr.mxu0 0.0
    %410 = vmatpush1.msra.mxu0 %v165
    %411 = vmatprep.subr.mxu0 0.0
    %412 = vmatpush1.msra.mxu0 %v168
    %413 = vmatprep.subr.mxu0 0.0
    %414 = vmatpush1.msra.mxu0 0.0
    %415 = vmatprep.subr.mxu0 0.0
    %416 = vmatpush1.msra.mxu0 0.0
    %417 = vmatprep.subr.mxu0 0.0
    %418 = vmatpush1.msra.mxu0 0.0
    %419 = vmatprep.subr.mxu0 0.0
    %420 = vmatpush1.msra.mxu0 0.0
    %421 = vmatprep.subr.mxu0 0.0
    %422 = vmatpush1.msra.mxu0 0.0
    %423 = vmatprep.subr.mxu0 0.0
    %424 = vmatpush1.msra.mxu0 0.0
    %425 = vmatprep.subr.mxu0 0.0
    %426 = vmatpush1.msra.mxu0 0.0
    %427 = vmatprep.subr.mxu0 0.0
    %428 = vmatpush1.msra.mxu0 0.0
    %429 = vmatprep.subr.mxu0 0.0
    %430 = vmatpush1.msra.mxu0 0.0
    %431 = vmatprep.subr.mxu0 0.0
    %432 = vmatpush1.msra.mxu0 0.0
    %433 = vmatprep.subr.mxu0 0.0
    %434 = vmatpush1.msra.mxu0 0.0
    %435 = vmatprep.subr.mxu0 0.0
    %436 = vmatpush1.msra.mxu0 0.0
    %437 = vmatprep.subr.mxu0 0.0
    %438 = vmatpush1.msra.mxu0 0.0
    %439 = vmatprep.subr.mxu0 0.0
    %440 = vmatpush1.msra.mxu0 0.0
    %441 = vmatprep.subr.mxu0 0.0
    %442 = vmatpush1.msra.mxu0 0.0
    %443 = vmatprep.subr.mxu0 0.0
    %444 = vmatpush1.msra.mxu0 0.0
    %445 = vmatprep.subr.mxu0 0.0
    %446 = vmatpush1.msra.mxu0 0.0
    %447 = vmatprep.subr.mxu0 0.0
    %448 = vmatpush1.msra.mxu0 0.0
    %449 = vmatprep.subr.mxu0 0.0
    %450 = vmatpush1.msra.mxu0 0.0
    %451 = vmatprep.subr.mxu0 0.0
    %452 = vmatpush1.msra.mxu0 0.0
    %453 = vmatprep.subr.mxu0 0.0
    %454 = vmatpush1.msra.mxu0 0.0
    %455 = vmatprep.subr.mxu0 0.0
    %456 = vmatpush1.msra.mxu0 0.0
    %457 = vmatprep.subr.mxu0 0.0
    %458 = vmatpush1.msra.mxu0 0.0
    %459 = vmatprep.subr.mxu0 0.0
    %460 = vmatpush1.msra.mxu0 0.0
    %461 = vmatprep.mubr.f32.mxu0 0.0
    %462 = vmatmul.mubr.f32.gmra.mrb[0].mxu0 %v374
    %v463 = vpop.f32.mrb[0].mxu0
    %v464 = vadd.f32 0.0, %v463
    %v465 = vpop.f32.mrb[0].mxu0
    %466 = vmatprep.mubr.f32.mxu0 0.0
    %467 = vmatmul.mubr.f32.gmra.mrb[0].mxu0 %v377
    %v468 = vpop.f32.mrb[0].mxu0
    %v469 = vadd.f32 0.0, %v468
    %v470 = vpop.f32.mrb[0].mxu0
    %471 = vmatprep.mubr.f32.mxu0 0.0
    %472 = vmatmul.mubr.f32.gmra.mrb[0].mxu0 %v380
    %v473 = vpop.f32.mrb[0].mxu0
    %v474 = vadd.f32 0.0, %v473
    %v475 = vpop.f32.mrb[0].mxu0
    %476 = vmatprep.mubr.f32.mxu0 0.0
    %477 = vmatmul.mubr.f32.gmra.mrb[0].mxu0 %v383
    %v478 = vpop.f32.mrb[0].mxu0
    %v479 = vadd.f32 0.0, %v478
    %v480 = vpop.f32.mrb[0].mxu0
    %481 = vmatprep.mubr.f32.mxu0 0.0
    %482 = vmatmul.mubr.f32.gmra.mrb[0].mxu0 %v386
    %v483 = vpop.f32.mrb[0].mxu0
    %v484 = vadd.f32 0.0, %v483
    %v485 = vpop.f32.mrb[0].mxu0
    %486 = vmatprep.mubr.f32.mxu0 0.0
    %487 = vmatmul.mubr.f32.gmra.mrb[0].mxu0 %v389
    %v488 = vpop.f32.mrb[0].mxu0
    %v489 = vadd.f32 0.0, %v488
    %v490 = vpop.f32.mrb[0].mxu0
    %491 = vmatprep.mubr.f32.mxu0 0.0
    %492 = vmatmul.mubr.f32.gmra.mrb[0].mxu0 %v392
    %v493 = vpop.f32.mrb[0].mxu0
    %v494 = vadd.f32 0.0, %v493
    %v495 = vpop.f32.mrb[0].mxu0
    %496 = vmatprep.mubr.f32.mxu0 0.0
    %497 = vmatmul.mubr.f32.gmra.mrb[0].mxu0 %v395
    %v498 = vpop.f32.mrb[0].mxu0
    %v499 = vadd.f32 0.0, %v498
    %v500 = vpop.f32.mrb[0].mxu0
    %501 = vdwg.mxu0
    %v502 = vmul.f32 %v365, %v464
    %v503 = vmul.f32 %v366, %v469
    %v504 = vmul.f32 %v367, %v474
    %v505 = vmul.f32 %v368, %v479
    %v506 = vmul.f32 %v369, %v484
    %v507 = vmul.f32 %v370, %v489
    %v508 = vmul.f32 %v371, %v494
    %v509 = vmul.f32 %v372, %v499
    %v510 = vadd.f32 %v148, %v502
    %v511 = vadd.f32 %v152, %v503
    %v512 = vadd.f32 %v155, %v504
    %v513 = vadd.f32 %v158, %v505
    %v514 = vadd.f32 %v149, %v506
    %v515 = vadd.f32 %v162, %v507
    %v516 = vadd.f32 %v165, %v508
    %v517 = vadd.f32 %v168, %v509
    %v519 = vsel %vm170, %v502, 0
    %v522 = vsel %vm170, %v503, 0
    %v525 = vsel %vm170, %v504, 0
    %v528 = vsel %vm170, %v505, 0
    %v531 = vsel %vm170, %v506, 0
    %v534 = vsel %vm170, %v507, 0
    %v537 = vsel %vm170, %v508, 0
    %v540 = vsel %vm170, %v509, 0
    %542 = vmatprep.subr.mxu0 0.0
    %543 = vmatpush1.xpose.msra.mxu0 %v519
    %544 = vmatprep.subr.mxu0 0.0
    %545 = vmatpush1.xpose.msra.mxu0 %v522
    %546 = vmatprep.subr.mxu0 0.0
    %547 = vmatpush1.xpose.msra.mxu0 %v525
    %548 = vmatprep.subr.mxu0 0.0
    %549 = vmatpush1.xpose.msra.mxu0 %v528
    %550 = vmatprep.subr.mxu0 0.0
    %551 = vmatpush1.xpose.msra.mxu0 %v531
    %552 = vmatprep.subr.mxu0 0.0
    %553 = vmatpush1.xpose.msra.mxu0 %v534
    %554 = vmatprep.subr.mxu0 0.0
    %555 = vmatpush1.xpose.msra.mxu0 %v537
    %556 = vmatprep.subr.mxu0 0.0
    %557 = vmatpush1.xpose.msra.mxu0 %v540
    %558 = vmatprep.subr.mxu0 0.0
    %559 = vmatpush1.xpose.msra.mxu0 0.0
    %560 = vmatprep.subr.mxu0 0.0
    %561 = vmatpush1.xpose.msra.mxu0 0.0
    %562 = vmatprep.subr.mxu0 0.0
    %563 = vmatpush1.xpose.msra.mxu0 0.0
    %564 = vmatprep.subr.mxu0 0.0
    %565 = vmatpush1.xpose.msra.mxu0 0.0
    %566 = vmatprep.subr.mxu0 0.0
    %567 = vmatpush1.xpose.msra.mxu0 0.0
    %568 = vmatprep.subr.mxu0 0.0
    %569 = vmatpush1.xpose.msra.mxu0 0.0
    %570 = vmatprep.subr.mxu0 0.0
    %571 = vmatpush1.xpose.msra.mxu0 0.0
    %572 = vmatprep.subr.mxu0 0.0
    %573 = vmatpush1.xpose.msra.mxu0 0.0
    %574 = vmatprep.subr.mxu0 0.0
    %575 = vmatpush1.xpose.msra.mxu0 0.0
    %576 = vmatprep.subr.mxu0 0.0
    %577 = vmatpush1.xpose.msra.mxu0 0.0
    %578 = vmatprep.subr.mxu0 0.0
    %579 = vmatpush1.xpose.msra.mxu0 0.0
    %580 = vmatprep.subr.mxu0 0.0
    %581 = vmatpush1.xpose.msra.mxu0 0.0
    %582 = vmatprep.subr.mxu0 0.0
    %583 = vmatpush1.xpose.msra.mxu0 0.0
    %584 = vmatprep.subr.mxu0 0.0
    %585 = vmatpush1.xpose.msra.mxu0 0.0
    %586 = vmatprep.subr.mxu0 0.0
    %587 = vmatpush1.xpose.msra.mxu0 0.0
    %588 = vmatprep.subr.mxu0 0.0
    %589 = vmatpush1.xpose.msra.mxu0 0.0
    %590 = vmatprep.subr.mxu0 0.0
    %591 = vmatpush1.xpose.msra.mxu0 0.0
    %592 = vmatprep.subr.mxu0 0.0
    %593 = vmatpush1.xpose.msra.mxu0 0.0
    %594 = vmatprep.subr.mxu0 0.0
    %595 = vmatpush1.xpose.msra.mxu0 0.0
    %596 = vmatprep.subr.mxu0 0.0
    %597 = vmatpush1.xpose.msra.mxu0 0.0
    %598 = vmatprep.subr.mxu0 0.0
    %599 = vmatpush1.xpose.msra.mxu0 0.0
    %600 = vmatprep.subr.mxu0 0.0
    %601 = vmatpush1.xpose.msra.mxu0 0.0
    %602 = vmatprep.subr.mxu0 0.0
    %603 = vmatpush1.xpose.msra.mxu0 0.0
    %604 = vmatprep.subr.mxu0 0.0
    %605 = vmatpush1.xpose.msra.mxu0 0.0
    %606 = vmatprep.mubr.f32.mxu0 0.0
    %607 = vmatmul.mubr.f32.gmra.mrb[0].mxu0 %v519
    %v608 = vpop.f32.mrb[0].mxu0
    %v609 = vadd.f32 0.0, %v608
    %v610 = vpop.f32.mrb[0].mxu0
    %611 = vmatprep.mubr.f32.mxu0 0.0
    %612 = vmatmul.mubr.f32.gmra.mrb[0].mxu0 %v522
    %v613 = vpop.f32.mrb[0].mxu0
    %v614 = vadd.f32 0.0, %v613
    %v615 = vpop.f32.mrb[0].mxu0
    %616 = vmatprep.mubr.f32.mxu0 0.0
    %617 = vmatmul.mubr.f32.gmra.mrb[0].mxu0 %v525
    %v618 = vpop.f32.mrb[0].mxu0
    %v619 = vadd.f32 0.0, %v618
    %v620 = vpop.f32.mrb[0].mxu0
    %621 = vmatprep.mubr.f32.mxu0 0.0
    %622 = vmatmul.mubr.f32.gmra.mrb[0].mxu0 %v528
    %v623 = vpop.f32.mrb[0].mxu0
    %v624 = vadd.f32 0.0, %v623
    %v625 = vpop.f32.mrb[0].mxu0
    %626 = vmatprep.mubr.f32.mxu0 0.0
    %627 = vmatmul.mubr.f32.gmra.mrb[0].mxu0 %v531
    %v628 = vpop.f32.mrb[0].mxu0
    %v629 = vadd.f32 0.0, %v628
    %v630 = vpop.f32.mrb[0].mxu0
    %631 = vmatprep.mubr.f32.mxu0 0.0
    %632 = vmatmul.mubr.f32.gmra.mrb[0].mxu0 %v534
    %v633 = vpop.f32.mrb[0].mxu0
    %v634 = vadd.f32 0.0, %v633
    %v635 = vpop.f32.mrb[0].mxu0
    %636 = vmatprep.mubr.f32.mxu0 0.0
    %637 = vmatmul.mubr.f32.gmra.mrb[0].mxu0 %v537
    %v638 = vpop.f32.mrb[0].mxu0
    %v639 = vadd.f32 0.0, %v638
    %v640 = vpop.f32.mrb[0].mxu0
    %641 = vmatprep.mubr.f32.mxu0 0.0
    %642 = vmatmul.mubr.f32.gmra.mrb[0].mxu0 %v540
    %v643 = vpop.f32.mrb[0].mxu0
    %v644 = vadd.f32 0.0, %v643
    %v645 = vpop.f32.mrb[0].mxu0
    %646 = vdwg.mxu0
    %vm647 = vcmp.gt.f32.partialorder %v609, 0.0
    %vm648 = vcmp.gt.f32.partialorder %v614, 0.0
    %vm649 = vcmp.gt.f32.partialorder %v619, 0.0
    %vm650 = vcmp.gt.f32.partialorder %v624, 0.0
    %vm651 = vcmp.gt.f32.partialorder %v629, 0.0
    %vm652 = vcmp.gt.f32.partialorder %v634, 0.0
    %vm653 = vcmp.gt.f32.partialorder %v639, 0.0
    %vm654 = vcmp.gt.f32.partialorder %v644, 0.0
    %vm655 = vmand %vm647, %vm140
    %vm656 = vmand %vm648, %vm141
    %vm657 = vmand %vm649, %vm142
    %vm658 = vmand %vm650, %vm143
    %vm659 = vmand %vm651, %vm144
    %vm660 = vmand %vm652, %vm145
    %vm661 = vmand %vm653, %vm146
    %vm662 = vmand %vm654, %vm147
    %v663 = vsel %vm655, 1.0, 0.0
    %v664 = vsel %vm656, 1.0, 0.0
    %v665 = vsel %vm657, 1.0, 0.0
    %v666 = vsel %vm658, 1.0, 0.0
    %v667 = vsel %vm659, 1.0, 0.0
    %v668 = vsel %vm660, 1.0, 0.0
    %v669 = vsel %vm661, 1.0, 0.0
    %v670 = vsel %vm662, 1.0, 0.0
    %v671 = vsel %vm316, %v663, 0.0
    %672 = vadd.xlane.f32.xlu0 %v671
    %v673 = vpop.xlane.xlu0 %672
    %v674 = vsel %vm316, %v664, 0.0
    %675 = vadd.xlane.f32.xlu0 %v674
    %v676 = vpop.xlane.xlu0 %675
    %v677 = vsel %vm316, %v665, 0.0
    %678 = vadd.xlane.f32.xlu0 %v677
    %v679 = vpop.xlane.xlu0 %678
    %v680 = vsel %vm316, %v666, 0.0
    %681 = vadd.xlane.f32.xlu0 %v680
    %v682 = vpop.xlane.xlu0 %681
    %v683 = vsel %vm316, %v667, 0.0
    %684 = vadd.xlane.f32.xlu0 %v683
    %v685 = vpop.xlane.xlu0 %684
    %v686 = vsel %vm316, %v668, 0.0
    %687 = vadd.xlane.f32.xlu0 %v686
    %v688 = vpop.xlane.xlu0 %687
    %v689 = vsel %vm316, %v669, 0.0
    %690 = vadd.xlane.f32.xlu0 %v689
    %v691 = vpop.xlane.xlu0 %690
    %v692 = vsel %vm316, %v670, 0.0
    %693 = vadd.xlane.f32.xlu0 %v692
    %v694 = vpop.xlane.xlu0 %693
    %vm695 = vcmp.gt.f32.partialorder %v673, 0.0
    %vm696 = vcmp.gt.f32.partialorder %v676, 0.0
    %vm697 = vcmp.gt.f32.partialorder %v679, 0.0
    %vm698 = vcmp.gt.f32.partialorder %v682, 0.0
    %vm699 = vcmp.gt.f32.partialorder %v685, 0.0
    %vm700 = vcmp.gt.f32.partialorder %v688, 0.0
    %vm701 = vcmp.gt.f32.partialorder %v691, 0.0
    %vm702 = vcmp.gt.f32.partialorder %v694, 0.0
    %v703 = vrcp.pop %v673
    %v704 = vmul.f32 1.0, %v703
    %v705 = vrcp.pop %v676
    %v706 = vmul.f32 1.0, %v705
    %v707 = vrcp.pop %v679
    %v708 = vmul.f32 1.0, %v707
    %v709 = vrcp.pop %v682
    %v710 = vmul.f32 1.0, %v709
    %v711 = vrcp.pop %v685
    %v712 = vmul.f32 1.0, %v711
    %v713 = vrcp.pop %v688
    %v714 = vmul.f32 1.0, %v713
    %v715 = vrcp.pop %v691
    %v716 = vmul.f32 1.0, %v715
    %v717 = vrcp.pop %v694
    %v718 = vmul.f32 1.0, %v717
    %v719 = vsel %vm695, %v704, %v673
    %v720 = vsel %vm696, %v706, %v676
    %v721 = vsel %vm697, %v708, %v679
    %v722 = vsel %vm698, %v710, %v682
    %v723 = vsel %vm699, %v712, %v685
    %v724 = vsel %vm700, %v714, %v688
    %v725 = vsel %vm701, %v716, %v691
    %v726 = vsel %vm702, %v718, %v694
    %v728 = vsel %vm316, %v663, 0
    %v731 = vsel %vm316, %v664, 0
    %v734 = vsel %vm316, %v665, 0
    %v737 = vsel %vm316, %v666, 0
    %v740 = vsel %vm316, %v667, 0
    %v743 = vsel %vm316, %v668, 0
    %v746 = vsel %vm316, %v669, 0
    %v749 = vsel %vm316, %v670, 0
    %751 = vmatprep.subr.mxu0 0.0
    %752 = vmatpush1.msra.mxu0 %v502
    %753 = vmatprep.subr.mxu0 0.0
    %754 = vmatpush1.msra.mxu0 %v503
    %755 = vmatprep.subr.mxu0 0.0
    %756 = vmatpush1.msra.mxu0 %v504
    %757 = vmatprep.subr.mxu0 0.0
    %758 = vmatpush1.msra.mxu0 %v505
    %759 = vmatprep.subr.mxu0 0.0
    %760 = vmatpush1.msra.mxu0 %v506
    %761 = vmatprep.subr.mxu0 0.0
    %762 = vmatpush1.msra.mxu0 %v507
    %763 = vmatprep.subr.mxu0 0.0
    %764 = vmatpush1.msra.mxu0 %v508
    %765 = vmatprep.subr.mxu0 0.0
    %766 = vmatpush1.msra.mxu0 %v509
    %767 = vmatprep.subr.mxu0 0.0
    %768 = vmatpush1.msra.mxu0 0.0
    %769 = vmatprep.subr.mxu0 0.0
    %770 = vmatpush1.msra.mxu0 0.0
    %771 = vmatprep.subr.mxu0 0.0
    %772 = vmatpush1.msra.mxu0 0.0
    %773 = vmatprep.subr.mxu0 0.0
    %774 = vmatpush1.msra.mxu0 0.0
    %775 = vmatprep.subr.mxu0 0.0
    %776 = vmatpush1.msra.mxu0 0.0
    %777 = vmatprep.subr.mxu0 0.0
    %778 = vmatpush1.msra.mxu0 0.0
    %779 = vmatprep.subr.mxu0 0.0
    %780 = vmatpush1.msra.mxu0 0.0
    %781 = vmatprep.subr.mxu0 0.0
    %782 = vmatpush1.msra.mxu0 0.0
    %783 = vmatprep.subr.mxu0 0.0
    %784 = vmatpush1.msra.mxu0 0.0
    %785 = vmatprep.subr.mxu0 0.0
    %786 = vmatpush1.msra.mxu0 0.0
    %787 = vmatprep.subr.mxu0 0.0
    %788 = vmatpush1.msra.mxu0 0.0
    %789 = vmatprep.subr.mxu0 0.0
    %790 = vmatpush1.msra.mxu0 0.0
    %791 = vmatprep.subr.mxu0 0.0
    %792 = vmatpush1.msra.mxu0 0.0
    %793 = vmatprep.subr.mxu0 0.0
    %794 = vmatpush1.msra.mxu0 0.0
    %795 = vmatprep.subr.mxu0 0.0
    %796 = vmatpush1.msra.mxu0 0.0
    %797 = vmatprep.subr.mxu0 0.0
    %798 = vmatpush1.msra.mxu0 0.0
    %799 = vmatprep.subr.mxu0 0.0
    %800 = vmatpush1.msra.mxu0 0.0
    %801 = vmatprep.subr.mxu0 0.0
    %802 = vmatpush1.msra.mxu0 0.0
    %803 = vmatprep.subr.mxu0 0.0
    %804 = vmatpush1.msra.mxu0 0.0
    %805 = vmatprep.subr.mxu0 0.0
    %806 = vmatpush1.msra.mxu0 0.0
    %807 = vmatprep.subr.mxu0 0.0
    %808 = vmatpush1.msra.mxu0 0.0
    %809 = vmatprep.subr.mxu0 0.0
    %810 = vmatpush1.msra.mxu0 0.0
    %811 = vmatprep.subr.mxu0 0.0
    %812 = vmatpush1.msra.mxu0 0.0
    %813 = vmatprep.subr.mxu0 0.0
    %814 = vmatpush1.msra.mxu0 0.0
    %815 = vmatprep.mubr.f32.mxu0 0.0
    %816 = vmatmul.mubr.f32.gmra.mrb[0].mxu0 %v728
    %v817 = vpop.f32.mrb[0].mxu0
    %v818 = vadd.f32 0.0, %v817
    %v819 = vpop.f32.mrb[0].mxu0
    %820 = vmatprep.mubr.f32.mxu0 0.0
    %821 = vmatmul.mubr.f32.gmra.mrb[0].mxu0 %v731
    %v822 = vpop.f32.mrb[0].mxu0
    %v823 = vadd.f32 0.0, %v822
    %v824 = vpop.f32.mrb[0].mxu0
    %825 = vmatprep.mubr.f32.mxu0 0.0
    %826 = vmatmul.mubr.f32.gmra.mrb[0].mxu0 %v734
    %v827 = vpop.f32.mrb[0].mxu0
    %v828 = vadd.f32 0.0, %v827
    %v829 = vpop.f32.mrb[0].mxu0
    %830 = vmatprep.mubr.f32.mxu0 0.0
    %831 = vmatmul.mubr.f32.gmra.mrb[0].mxu0 %v737
    %v832 = vpop.f32.mrb[0].mxu0
    %v833 = vadd.f32 0.0, %v832
    %v834 = vpop.f32.mrb[0].mxu0
    %835 = vmatprep.mubr.f32.mxu0 0.0
    %836 = vmatmul.mubr.f32.gmra.mrb[0].mxu0 %v740
    %v837 = vpop.f32.mrb[0].mxu0
    %v838 = vadd.f32 0.0, %v837
    %v839 = vpop.f32.mrb[0].mxu0
    %840 = vmatprep.mubr.f32.mxu0 0.0
    %841 = vmatmul.mubr.f32.gmra.mrb[0].mxu0 %v743
    %v842 = vpop.f32.mrb[0].mxu0
    %v843 = vadd.f32 0.0, %v842
    %v844 = vpop.f32.mrb[0].mxu0
    %845 = vmatprep.mubr.f32.mxu0 0.0
    %846 = vmatmul.mubr.f32.gmra.mrb[0].mxu0 %v746
    %v847 = vpop.f32.mrb[0].mxu0
    %v848 = vadd.f32 0.0, %v847
    %v849 = vpop.f32.mrb[0].mxu0
    %850 = vmatprep.mubr.f32.mxu0 0.0
    %851 = vmatmul.mubr.f32.gmra.mrb[0].mxu0 %v749
    %v852 = vpop.f32.mrb[0].mxu0
    %v853 = vadd.f32 0.0, %v852
    %v854 = vpop.f32.mrb[0].mxu0
    %855 = vdwg.mxu0
    %v856 = vmul.f32 %v719, %v818
    %v857 = vmul.f32 %v720, %v823
    %v858 = vmul.f32 %v721, %v828
    %v859 = vmul.f32 %v722, %v833
    %v860 = vmul.f32 %v723, %v838
    %v861 = vmul.f32 %v724, %v843
    %v862 = vmul.f32 %v725, %v848
    %v863 = vmul.f32 %v726, %v853
    %v864 = vadd.f32 %v510, %v856
    %v865 = vadd.f32 %v511, %v857
    %v866 = vadd.f32 %v512, %v858
    %v867 = vadd.f32 %v513, %v859
    %v868 = vadd.f32 %v514, %v860
    %v869 = vadd.f32 %v515, %v861
    %v870 = vadd.f32 %v516, %v862
    %v871 = vadd.f32 %v517, %v863
    %v873 = vsel %vm170, %v856, 0
    %v876 = vsel %vm170, %v857, 0
    %v879 = vsel %vm170, %v858, 0
    %v882 = vsel %vm170, %v859, 0
    %v885 = vsel %vm170, %v860, 0
    %v888 = vsel %vm170, %v861, 0
    %v891 = vsel %vm170, %v862, 0
    %v894 = vsel %vm170, %v863, 0
    %896 = vmatprep.subr.mxu0 0.0
    %897 = vmatpush1.xpose.msra.mxu0 %v873
    %898 = vmatprep.subr.mxu0 0.0
    %899 = vmatpush1.xpose.msra.mxu0 %v876
    %900 = vmatprep.subr.mxu0 0.0
    %901 = vmatpush1.xpose.msra.mxu0 %v879
    %902 = vmatprep.subr.mxu0 0.0
    %903 = vmatpush1.xpose.msra.mxu0 %v882
    %904 = vmatprep.subr.mxu0 0.0
    %905 = vmatpush1.xpose.msra.mxu0 %v885
    %906 = vmatprep.subr.mxu0 0.0
    %907 = vmatpush1.xpose.msra.mxu0 %v888
    %908 = vmatprep.subr.mxu0 0.0
    %909 = vmatpush1.xpose.msra.mxu0 %v891
    %910 = vmatprep.subr.mxu0 0.0
    %911 = vmatpush1.xpose.msra.mxu0 %v894
    %912 = vmatprep.subr.mxu0 0.0
    %913 = vmatpush1.xpose.msra.mxu0 0.0
    %914 = vmatprep.subr.mxu0 0.0
    %915 = vmatpush1.xpose.msra.mxu0 0.0
    %916 = vmatprep.subr.mxu0 0.0
    %917 = vmatpush1.xpose.msra.mxu0 0.0
    %918 = vmatprep.subr.mxu0 0.0
    %919 = vmatpush1.xpose.msra.mxu0 0.0
    %920 = vmatprep.subr.mxu0 0.0
    %921 = vmatpush1.xpose.msra.mxu0 0.0
    %922 = vmatprep.subr.mxu0 0.0
    %923 = vmatpush1.xpose.msra.mxu0 0.0
    %924 = vmatprep.subr.mxu0 0.0
    %925 = vmatpush1.xpose.msra.mxu0 0.0
    %926 = vmatprep.subr.mxu0 0.0
    %927 = vmatpush1.xpose.msra.mxu0 0.0
    %928 = vmatprep.subr.mxu0 0.0
    %929 = vmatpush1.xpose.msra.mxu0 0.0
    %930 = vmatprep.subr.mxu0 0.0
    %931 = vmatpush1.xpose.msra.mxu0 0.0
    %932 = vmatprep.subr.mxu0 0.0
    %933 = vmatpush1.xpose.msra.mxu0 0.0
    %934 = vmatprep.subr.mxu0 0.0
    %935 = vmatpush1.xpose.msra.mxu0 0.0
    %936 = vmatprep.subr.mxu0 0.0
    %937 = vmatpush1.xpose.msra.mxu0 0.0
    %938 = vmatprep.subr.mxu0 0.0
    %939 = vmatpush1.xpose.msra.mxu0 0.0
    %940 = vmatprep.subr.mxu0 0.0
    %941 = vmatpush1.xpose.msra.mxu0 0.0
    %942 = vmatprep.subr.mxu0 0.0
    %943 = vmatpush1.xpose.msra.mxu0 0.0
    %944 = vmatprep.subr.mxu0 0.0
    %945 = vmatpush1.xpose.msra.mxu0 0.0
    %946 = vmatprep.subr.mxu0 0.0
    %947 = vmatpush1.xpose.msra.mxu0 0.0
    %948 = vmatprep.subr.mxu0 0.0
    %949 = vmatpush1.xpose.msra.mxu0 0.0
    %950 = vmatprep.subr.mxu0 0.0
    %951 = vmatpush1.xpose.msra.mxu0 0.0
    %952 = vmatprep.subr.mxu0 0.0
    %953 = vmatpush1.xpose.msra.mxu0 0.0
    %954 = vmatprep.subr.mxu0 0.0
    %955 = vmatpush1.xpose.msra.mxu0 0.0
    %956 = vmatprep.subr.mxu0 0.0
    %957 = vmatpush1.xpose.msra.mxu0 0.0
    %958 = vmatprep.subr.mxu0 0.0
    %959 = vmatpush1.xpose.msra.mxu0 0.0
    %960 = vmatprep.mubr.f32.mxu0 0.0
    %961 = vmatmul.mubr.f32.gmra.mrb[0].mxu0 %v873
    %v962 = vpop.f32.mrb[0].mxu0
    %v963 = vadd.f32 0.0, %v962
    %v964 = vpop.f32.mrb[0].mxu0
    %965 = vmatprep.mubr.f32.mxu0 0.0
    %966 = vmatmul.mubr.f32.gmra.mrb[0].mxu0 %v876
    %v967 = vpop.f32.mrb[0].mxu0
    %v968 = vadd.f32 0.0, %v967
    %v969 = vpop.f32.mrb[0].mxu0
    %970 = vmatprep.mubr.f32.mxu0 0.0
    %971 = vmatmul.mubr.f32.gmra.mrb[0].mxu0 %v879
    %v972 = vpop.f32.mrb[0].mxu0
    %v973 = vadd.f32 0.0, %v972
    %v974 = vpop.f32.mrb[0].mxu0
    %975 = vmatprep.mubr.f32.mxu0 0.0
    %976 = vmatmul.mubr.f32.gmra.mrb[0].mxu0 %v882
    %v977 = vpop.f32.mrb[0].mxu0
    %v978 = vadd.f32 0.0, %v977
    %v979 = vpop.f32.mrb[0].mxu0
    %980 = vmatprep.mubr.f32.mxu0 0.0
    %981 = vmatmul.mubr.f32.gmra.mrb[0].mxu0 %v885
    %v982 = vpop.f32.mrb[0].mxu0
    %v983 = vadd.f32 0.0, %v982
    %v984 = vpop.f32.mrb[0].mxu0
    %985 = vmatprep.mubr.f32.mxu0 0.0
    %986 = vmatmul.mubr.f32.gmra.mrb[0].mxu0 %v888
    %v987 = vpop.f32.mrb[0].mxu0
    %v988 = vadd.f32 0.0, %v987
    %v989 = vpop.f32.mrb[0].mxu0
    %990 = vmatprep.mubr.f32.mxu0 0.0
    %991 = vmatmul.mubr.f32.gmra.mrb[0].mxu0 %v891
    %v992 = vpop.f32.mrb[0].mxu0
    %v993 = vadd.f32 0.0, %v992
    %v994 = vpop.f32.mrb[0].mxu0
    %995 = vmatprep.mubr.f32.mxu0 0.0
    %996 = vmatmul.mubr.f32.gmra.mrb[0].mxu0 %v894
    %v997 = vpop.f32.mrb[0].mxu0
    %v998 = vadd.f32 0.0, %v997
    %v999 = vpop.f32.mrb[0].mxu0
    %1000 = vdwg.mxu0
    %vm1001 = vcmp.gt.f32.partialorder %v963, 0.0
    %vm1002 = vcmp.gt.f32.partialorder %v968, 0.0
    %vm1003 = vcmp.gt.f32.partialorder %v973, 0.0
    %vm1004 = vcmp.gt.f32.partialorder %v978, 0.0
    %vm1005 = vcmp.gt.f32.partialorder %v983, 0.0
    %vm1006 = vcmp.gt.f32.partialorder %v988, 0.0
    %vm1007 = vcmp.gt.f32.partialorder %v993, 0.0
    %vm1008 = vcmp.gt.f32.partialorder %v998, 0.0
    %vm1009 = vmand %vm1001, %vm140
    %vm1010 = vmand %vm1002, %vm141
    %vm1011 = vmand %vm1003, %vm142
    %vm1012 = vmand %vm1004, %vm143
    %vm1013 = vmand %vm1005, %vm144
    %vm1014 = vmand %vm1006, %vm145
    %vm1015 = vmand %vm1007, %vm146
    %vm1016 = vmand %vm1008, %vm147
    %v1017 = vsel %vm1009, 1.0, 0.0
    %v1018 = vsel %vm1010, 1.0, 0.0
    %v1019 = vsel %vm1011, 1.0, 0.0
    %v1020 = vsel %vm1012, 1.0, 0.0
    %v1021 = vsel %vm1013, 1.0, 0.0
    %v1022 = vsel %vm1014, 1.0, 0.0
    %v1023 = vsel %vm1015, 1.0, 0.0
    %v1024 = vsel %vm1016, 1.0, 0.0
    %v1025 = vsel %vm316, %v1017, 0.0
    %1026 = vadd.xlane.f32.xlu0 %v1025
    %v1027 = vpop.xlane.xlu0 %1026
    %v1028 = vsel %vm316, %v1018, 0.0
    %1029 = vadd.xlane.f32.xlu0 %v1028
    %v1030 = vpop.xlane.xlu0 %1029
    %v1031 = vsel %vm316, %v1019, 0.0
    %1032 = vadd.xlane.f32.xlu0 %v1031
    %v1033 = vpop.xlane.xlu0 %1032
    %v1034 = vsel %vm316, %v1020, 0.0
    %1035 = vadd.xlane.f32.xlu0 %v1034
    %v1036 = vpop.xlane.xlu0 %1035
    %v1037 = vsel %vm316, %v1021, 0.0
    %1038 = vadd.xlane.f32.xlu0 %v1037
    %v1039 = vpop.xlane.xlu0 %1038
    %v1040 = vsel %vm316, %v1022, 0.0
    %1041 = vadd.xlane.f32.xlu0 %v1040
    %v1042 = vpop.xlane.xlu0 %1041
    %v1043 = vsel %vm316, %v1023, 0.0
    %1044 = vadd.xlane.f32.xlu0 %v1043
    %v1045 = vpop.xlane.xlu0 %1044
    %v1046 = vsel %vm316, %v1024, 0.0
    %1047 = vadd.xlane.f32.xlu0 %v1046
    %v1048 = vpop.xlane.xlu0 %1047
    %vm1049 = vcmp.gt.f32.partialorder %v1027, 0.0
    %vm1050 = vcmp.gt.f32.partialorder %v1030, 0.0
    %vm1051 = vcmp.gt.f32.partialorder %v1033, 0.0
    %vm1052 = vcmp.gt.f32.partialorder %v1036, 0.0
    %vm1053 = vcmp.gt.f32.partialorder %v1039, 0.0
    %vm1054 = vcmp.gt.f32.partialorder %v1042, 0.0
    %vm1055 = vcmp.gt.f32.partialorder %v1045, 0.0
    %vm1056 = vcmp.gt.f32.partialorder %v1048, 0.0
    %v1057 = vrcp.pop %v1027
    %v1058 = vmul.f32 1.0, %v1057
    %v1059 = vrcp.pop %v1030
    %v1060 = vmul.f32 1.0, %v1059
    %v1061 = vrcp.pop %v1033
    %v1062 = vmul.f32 1.0, %v1061
    %v1063 = vrcp.pop %v1036
    %v1064 = vmul.f32 1.0, %v1063
    %v1065 = vrcp.pop %v1039
    %v1066 = vmul.f32 1.0, %v1065
    %v1067 = vrcp.pop %v1042
    %v1068 = vmul.f32 1.0, %v1067
    %v1069 = vrcp.pop %v1045
    %v1070 = vmul.f32 1.0, %v1069
    %v1071 = vrcp.pop %v1048
    %v1072 = vmul.f32 1.0, %v1071
    %v1073 = vsel %vm1049, %v1058, %v1027
    %v1074 = vsel %vm1050, %v1060, %v1030
    %v1075 = vsel %vm1051, %v1062, %v1033
    %v1076 = vsel %vm1052, %v1064, %v1036
    %v1077 = vsel %vm1053, %v1066, %v1039
    %v1078 = vsel %vm1054, %v1068, %v1042
    %v1079 = vsel %vm1055, %v1070, %v1045
    %v1080 = vsel %vm1056, %v1072, %v1048
    %v1082 = vsel %vm316, %v1017, 0
    %v1085 = vsel %vm316, %v1018, 0
    %v1088 = vsel %vm316, %v1019, 0
    %v1091 = vsel %vm316, %v1020, 0
    %v1094 = vsel %vm316, %v1021, 0
    %v1097 = vsel %vm316, %v1022, 0
    %v1100 = vsel %vm316, %v1023, 0
    %v1103 = vsel %vm316, %v1024, 0
    %1105 = vmatprep.subr.mxu0 0.0
    %1106 = vmatpush1.msra.mxu0 %v856
    %1107 = vmatprep.subr.mxu0 0.0
    %1108 = vmatpush1.msra.mxu0 %v857
    %1109 = vmatprep.subr.mxu0 0.0
    %1110 = vmatpush1.msra.mxu0 %v858
    %1111 = vmatprep.subr.mxu0 0.0
    %1112 = vmatpush1.msra.mxu0 %v859
    %1113 = vmatprep.subr.mxu0 0.0
    %1114 = vmatpush1.msra.mxu0 %v860
    %1115 = vmatprep.subr.mxu0 0.0
    %1116 = vmatpush1.msra.mxu0 %v861
    %1117 = vmatprep.subr.mxu0 0.0
    %1118 = vmatpush1.msra.mxu0 %v862
    %1119 = vmatprep.subr.mxu0 0.0
    %1120 = vmatpush1.msra.mxu0 %v863
    %1121 = vmatprep.subr.mxu0 0.0
    %1122 = vmatpush1.msra.mxu0 0.0
    %1123 = vmatprep.subr.mxu0 0.0
    %1124 = vmatpush1.msra.mxu0 0.0
    %1125 = vmatprep.subr.mxu0 0.0
    %1126 = vmatpush1.msra.mxu0 0.0
    %1127 = vmatprep.subr.mxu0 0.0
    %1128 = vmatpush1.msra.mxu0 0.0
    %1129 = vmatprep.subr.mxu0 0.0
    %1130 = vmatpush1.msra.mxu0 0.0
    %1131 = vmatprep.subr.mxu0 0.0
    %1132 = vmatpush1.msra.mxu0 0.0
    %1133 = vmatprep.subr.mxu0 0.0
    %1134 = vmatpush1.msra.mxu0 0.0
    %1135 = vmatprep.subr.mxu0 0.0
    %1136 = vmatpush1.msra.mxu0 0.0
    %1137 = vmatprep.subr.mxu0 0.0
    %1138 = vmatpush1.msra.mxu0 0.0
    %1139 = vmatprep.subr.mxu0 0.0
    %1140 = vmatpush1.msra.mxu0 0.0
    %1141 = vmatprep.subr.mxu0 0.0
    %1142 = vmatpush1.msra.mxu0 0.0
    %1143 = vmatprep.subr.mxu0 0.0
    %1144 = vmatpush1.msra.mxu0 0.0
    %1145 = vmatprep.subr.mxu0 0.0
    %1146 = vmatpush1.msra.mxu0 0.0
    %1147 = vmatprep.subr.mxu0 0.0
    %1148 = vmatpush1.msra.mxu0 0.0
    %1149 = vmatprep.subr.mxu0 0.0
    %1150 = vmatpush1.msra.mxu0 0.0
    %1151 = vmatprep.subr.mxu0 0.0
    %1152 = vmatpush1.msra.mxu0 0.0
    %1153 = vmatprep.subr.mxu0 0.0
    %1154 = vmatpush1.msra.mxu0 0.0
    %1155 = vmatprep.subr.mxu0 0.0
    %1156 = vmatpush1.msra.mxu0 0.0
    %1157 = vmatprep.subr.mxu0 0.0
    %1158 = vmatpush1.msra.mxu0 0.0
    %1159 = vmatprep.subr.mxu0 0.0
    %1160 = vmatpush1.msra.mxu0 0.0
    %1161 = vmatprep.subr.mxu0 0.0
    %1162 = vmatpush1.msra.mxu0 0.0
    %1163 = vmatprep.subr.mxu0 0.0
    %1164 = vmatpush1.msra.mxu0 0.0
    %1165 = vmatprep.subr.mxu0 0.0
    %1166 = vmatpush1.msra.mxu0 0.0
    %1167 = vmatprep.subr.mxu0 0.0
    %1168 = vmatpush1.msra.mxu0 0.0
    %1169 = vmatprep.mubr.f32.mxu0 0.0
    %1170 = vmatmul.mubr.f32.gmra.mrb[0].mxu0 %v1082
    %v1171 = vpop.f32.mrb[0].mxu0
    %v1172 = vadd.f32 0.0, %v1171
    %v1173 = vpop.f32.mrb[0].mxu0
    %1174 = vmatprep.mubr.f32.mxu0 0.0
    %1175 = vmatmul.mubr.f32.gmra.mrb[0].mxu0 %v1085
    %v1176 = vpop.f32.mrb[0].mxu0
    %v1177 = vadd.f32 0.0, %v1176
    %v1178 = vpop.f32.mrb[0].mxu0
    %1179 = vmatprep.mubr.f32.mxu0 0.0
    %1180 = vmatmul.mubr.f32.gmra.mrb[0].mxu0 %v1088
    %v1181 = vpop.f32.mrb[0].mxu0
    %v1182 = vadd.f32 0.0, %v1181
    %v1183 = vpop.f32.mrb[0].mxu0
    %1184 = vmatprep.mubr.f32.mxu0 0.0
    %1185 = vmatmul.mubr.f32.gmra.mrb[0].mxu0 %v1091
    %v1186 = vpop.f32.mrb[0].mxu0
    %v1187 = vadd.f32 0.0, %v1186
    %v1188 = vpop.f32.mrb[0].mxu0
    %1189 = vmatprep.mubr.f32.mxu0 0.0
    %1190 = vmatmul.mubr.f32.gmra.mrb[0].mxu0 %v1094
    %v1191 = vpop.f32.mrb[0].mxu0
    %v1192 = vadd.f32 0.0, %v1191
    %v1193 = vpop.f32.mrb[0].mxu0
    %1194 = vmatprep.mubr.f32.mxu0 0.0
    %1195 = vmatmul.mubr.f32.gmra.mrb[0].mxu0 %v1097
    %v1196 = vpop.f32.mrb[0].mxu0
    %v1197 = vadd.f32 0.0, %v1196
    %v1198 = vpop.f32.mrb[0].mxu0
    %1199 = vmatprep.mubr.f32.mxu0 0.0
    %1200 = vmatmul.mubr.f32.gmra.mrb[0].mxu0 %v1100
    %v1201 = vpop.f32.mrb[0].mxu0
    %v1202 = vadd.f32 0.0, %v1201
    %v1203 = vpop.f32.mrb[0].mxu0
    %1204 = vmatprep.mubr.f32.mxu0 0.0
    %1205 = vmatmul.mubr.f32.gmra.mrb[0].mxu0 %v1103
    %v1206 = vpop.f32.mrb[0].mxu0
    %v1207 = vadd.f32 0.0, %v1206
    %v1208 = vpop.f32.mrb[0].mxu0
    %1209 = vdwg.mxu0
    %v1210 = vmul.f32 %v1073, %v1172
    %v1211 = vmul.f32 %v1074, %v1177
    %v1212 = vmul.f32 %v1075, %v1182
    %v1213 = vmul.f32 %v1076, %v1187
    %v1214 = vmul.f32 %v1077, %v1192
    %v1215 = vmul.f32 %v1078, %v1197
    %v1216 = vmul.f32 %v1079, %v1202
    %v1217 = vmul.f32 %v1080, %v1207
    %v1218 = vadd.f32 %v864, %v1210
    %v1219 = vadd.f32 %v865, %v1211
    %v1220 = vadd.f32 %v866, %v1212
    %v1221 = vadd.f32 %v867, %v1213
    %v1222 = vadd.f32 %v868, %v1214
    %v1223 = vadd.f32 %v869, %v1215
    %v1224 = vadd.f32 %v870, %v1216
    %v1225 = vadd.f32 %v871, %v1217
    %1226 = vst.msk [vmem:[#allocation5] sm:$0xff] %vm170, %v1218
    %1228 = vrot.lane.b32.xlu0 %v1219, 32
    %v1229 = vpop.permute.xlu0 %1228
    %vm1231 = vcmask 523520
    %1232 = vst.msk [vmem:[#allocation5] sm:$0xff] %vm1231, %v1229
    %1234 = vrot.lane.b32.xlu0 %v1220, 64
    %v1235 = vpop.permute.xlu0 %1234
    %vm1237 = vcmask 785920
    %1238 = vst.msk [vmem:[#allocation5] sm:$0xff] %vm1237, %v1235
    %1240 = vrot.lane.b32.xlu0 %v1221, 96
    %v1241 = vpop.permute.xlu0 %1240
    %vm1243 = vcmask 1048320
    %1244 = vst.msk [vmem:[#allocation5] sm:$0xff] %vm1243, %v1241
    %1245 = vst.msk [vmem:[#allocation5 + $0x8] sm:$0xff] %vm170, %v1222
    %1247 = vrot.lane.b32.xlu0 %v1223, 32
    %v1248 = vpop.permute.xlu0 %1247
    %1250 = vst.msk [vmem:[#allocation5 + $0x8] sm:$0xff] %vm1231, %v1248
    %1252 = vrot.lane.b32.xlu0 %v1224, 64
    %v1253 = vpop.permute.xlu0 %1252
    %1255 = vst.msk [vmem:[#allocation5 + $0x8] sm:$0xff] %vm1237, %v1253
    %1257 = vrot.lane.b32.xlu0 %v1225, 96
    %v1258 = vpop.permute.xlu0 %1257
    %1260 = vst.msk [vmem:[#allocation5 + $0x8] sm:$0xff] %vm1243, %v1258
    // Predicated region
    $region10: #{tpu_custom_call.1} parent=1 // pred_check
      _
    $region11: #{tpu_custom_call.1} parent=1 // pred_check_branch
      %1262 = sbr.rel (0) target = $region13
    $region12: #{tpu_custom_call.1} parent=1 // pred_region
      %s1264 = ssub.s32 256, 256
      %1265 = vsyncadd [#allocation4], %s1264
      %s1267 = sshll.u32 [#allocation5], 4
      %s1268 = int_to_ptr.vmem [resolvable:$true] %s1267
      %1270 = dma.vmem_to_hbm [thread:$0]  %s1268, 256, %s1, [#allocation4]
    $region13: #{tpu_custom_call.1} parent=1 // pred_fallthru
      _
    // Predicated region
    $region14: #{tpu_custom_call.1} parent=1 // pred_check
      _
    $region15: #{tpu_custom_call.1} parent=1 // pred_check_branch
      %1272 = sbr.rel (0) target = $region17
    $region16: #{tpu_custom_call.1} parent=1 // pred_region
      %1273 = dma.done [#allocation4], 256
    $region17: #{tpu_custom_call.1} parent=1 // pred_fallthru
      _
    %1274 = vsyncpa [#allocation3], 1
    %1275 = vsyncpa [#allocation4], 1

</llo_original>
